<compile_context>
chip_gen: v5e
topology: v5e:2x2
jax: 0.10.0
libtpu: 0.0.40
codegen_flags: <defaults>
</compile_context>

<pallas_src>
import jax
import jax.numpy as jnp
from jax.experimental import pallas as pl
from jax.experimental.pallas import tpu as pltpu


def _copy_kernel(x_ref, o_ref):
    # Pure vreg ld/st stream; limited only by HBM DMA bandwidth.
    o_ref[...] = x_ref[...]


def _round_up(v: int, m: int) -> int:
    return ((v + m - 1) // m) * m


def same_pad(
    x: jax.Array,
    kernel_size: int,
    causal: bool = False,
    *,
    min_pallas_bytes: int = 1 << 20,
) -> jax.Array:
    """Pallas implementation of SamePad.forward for an (N, C, T) tensor."""
    if causal:
        remove = kernel_size - 1
    else:
        remove = 1 if kernel_size % 2 == 0 else 0

    n, c, t = x.shape

    # Identity case: nothing to trim, nothing to copy.
    if remove <= 0:
        return x

    t_out = t - remove
    if t_out <= 0:
        # Degenerate: everything removed (matches x[:, :, :-remove] semantics).
        return x[:, :, :0]

    r = n * c
    itemsize = jnp.dtype(x.dtype).itemsize
    out_bytes = r * t_out * itemsize

    # Small / short-sequence fast path: an XLA slice fuses into the consuming
    # conv and beats a dedicated memcpy kernel at these sizes.
    if t_out < 128 or out_bytes < min_pallas_bytes:
        return x[:, :, :t_out]

    # Fold batch and channels so sublanes are densely packed.
    x2 = x.reshape(r, t)

    # Row tile: multiple of 8 (256) when tiled, or the full extent when small.
    tile_r = r if r <= 256 else 256
    grid_r = pl.cdiv(r, tile_r)

    # Time tile: aim for ~2 MiB per buffer per step (scales as 4/itemsize in
    # lanes), then balance the split so no near-empty edge block exists.
    target_bytes = 2 << 20
    cap = max(128, ((target_bytes // (tile_r * itemsize)) // 128) * 128)

    n_t = pl.cdiv(t_out, cap)
    # Guarantee >= 2 blocks overall (when feasible) so v7x's two TensorCores
    # both get a parallel shard and the pipeline can double-buffer.
    if grid_r == 1 and n_t == 1 and t_out >= 256:
        n_t = 2
    tile_t = _round_up(pl.cdiv(t_out, n_t), 128)
    grid_t = pl.cdiv(t_out, tile_t)

    y2 = pl.pallas_call(
        _copy_kernel,
        out_shape=jax.ShapeDtypeStruct((r, t_out), x.dtype),
        grid_spec=pltpu.PrefetchScalarGridSpec(
            num_scalar_prefetch=0,
            grid=(grid_r, grid_t),
            in_specs=[pl.BlockSpec((tile_r, tile_t), lambda i, j: (i, j))],
            out_specs=pl.BlockSpec((tile_r, tile_t), lambda i, j: (i, j)),
        ),
        compiler_params=pltpu.CompilerParams(
            dimension_semantics=("parallel", "parallel"),
            # Explicit budget: covers the double-buffered in+out windows and is
            # valid on v5e (128 MiB phys), v6e (128 MiB) and v7x (64 MiB).
            vmem_limit_bytes=32 << 20,
        ),
    )(x2)

    return y2.reshape(n, c, t_out)


if __name__ == "__main__":
    key = jax.random.PRNGKey(0)

    # Small shapes consistent with conv-discriminator activations: (N, C, T).
    N, C, T = 2, 4, 16
    x = jax.random.normal(key, (N, C, T), dtype=jnp.float32)

    # kernel_size=4 (even), causal=False -> remove=1  => output (2, 4, 15)
    # (tiny input -> fused XLA-slice fast path)
    y = jax.block_until_ready(same_pad(x, kernel_size=4, causal=False))
    assert y.shape == (N, C, T - 1)
    assert jnp.allclose(y, x[:, :, :-1])

    # causal=True, kernel_size=3 -> remove=2  => output (2, 4, 14)
    y2 = jax.block_until_ready(same_pad(x, kernel_size=3, causal=True))
    assert y2.shape == (N, C, T - 2)
    assert jnp.allclose(y2, x[:, :, :-2])

    # kernel_size odd, non-causal -> remove=0 => identity (nothing launched)
    y3 = jax.block_until_ready(same_pad(x, kernel_size=5, causal=False))
    assert y3.shape == (N, C, T)
    assert jnp.allclose(y3, x)

    # Force the Pallas tiled-copy path on a modest sequence (r=16, t_out=1023):
    # grid splits the time axis into two 512-lane blocks.
    xm = jax.random.normal(key, (2, 8, 1024), dtype=jnp.float32)
    ym = jax.block_until_ready(
        same_pad(xm, kernel_size=4, causal=False, min_pallas_bytes=0)
    )
    assert ym.shape == (2, 8, 1023)
    assert jnp.allclose(ym, xm[:, :, :-1])

    # Large enough to take the Pallas path by default; balanced split gives
    # two 256x1024 blocks (>= 2 parallel blocks for v7x megacore).
    xl = jax.random.normal(key, (4, 64, 2048), dtype=jnp.float32)
    yl = jax.block_until_ready(same_pad(xl, kernel_size=4, causal=False))
    assert yl.shape == (4, 64, 2047)
    assert jnp.allclose(yl, xl[:, :, :-1])

    print("KERNEL_OK")
</pallas_src>

<mosaic_0001>
module attributes {stable_mosaic.version = 11 : i64} {
  func.func @_copy_kernel(%arg0: i32, %arg1: i32, %arg2: memref<16x512xf32, #tpu.memory_space<vmem>>, %arg3: memref<16x512xf32, #tpu.memory_space<vmem>>) attributes {dimension_semantics = [#tpu.dimension_semantics<parallel>, #tpu.dimension_semantics<parallel>], iteration_bounds = array<i64: 1, 2>, scalar_prefetch = 0 : i64, scratch_operands = 0 : i64, tpu.core_type = #tpu.core_type<tc>, window_params = [{transform_indices = @transform_0, window_bounds = array<i64: 16, 512>}, {transform_indices = @transform_1, window_bounds = array<i64: 16, 512>}]} {
    %c0 = arith.constant 0 : index
    %c0_0 = arith.constant 0 : index
    %0 = vector.load %arg2[%c0, %c0_0] : memref<16x512xf32, #tpu.memory_space<vmem>>, vector<16x512xf32>
    %c0_1 = arith.constant 0 : index
    %c0_2 = arith.constant 0 : index
    %1 = vector.load %arg3[%c0_1, %c0_2] : memref<16x512xf32, #tpu.memory_space<vmem>>, vector<16x512xf32>
    tpu.vector_store %arg3[%c0_1, %c0_2], %0 {strides = array<i32>} : memref<16x512xf32, #tpu.memory_space<vmem>>, vector<16x512xf32>,
    return
  }
  func.func @transform_0(%arg0: i32, %arg1: i32) -> (i32, i32) {
    %c0_i32 = arith.constant 0 : i32
    return %arg0, %arg1 : i32, i32
  }
  func.func @transform_1(%arg0: i32, %arg1: i32) -> (i32, i32) {
    %c0_i32 = arith.constant 0 : i32
    return %arg0, %arg1 : i32, i32
  }
}

</mosaic_0001>

<llo_original>
// kernel: tpu_custom_call.1
$region0: #{tpu_custom_call.1}
  #allocation0 [shape = 'u32[]', space=smem, size = 0x4, offset = 0x4, fixed_abs, tag = 'smem constant byte address 0x4 - core index']
  #allocation1 [shape = 'u32[72,128]{1,0:T(1,128)}', space=vmem, size = 0x9000, scoped, tag = 'internal scratch']
  %s0 = inlined_call_operand.hbm [shape: f32[16,1024], index: 0, kind: input, shape index: {}]
  %s1 = inlined_call_operand.hbm [shape: f32[16,1023], index: 1, kind: output, shape index: {}]
  %s2 = sld [smem:[#allocation0]]
  $region41: #{tpu_custom_call.1} parent=0
    _
  %s4 = ssub.s32 1, %s2
  %s5 = scalar_select 0, %s4, %s2
  $region1: #{tpu_custom_call.1} parent=0
    #allocation2 [shape = 'u8[65536]{0}', space=vmem, size = 0x10000, scoped, tag = 'input window, operand 0']
    #allocation3 [shape = 's32[2]{0}', space=sflag, size = 0x8, scoped, tag = 'scoped memory for tpu_custom_call.1']
    #allocation4 [shape = 's32[2]{0}', space=sflag, size = 0x8, scoped, tag = 'scoped memory for tpu_custom_call.1']
    #allocation5 [shape = 'u8[65536]{0}', space=vmem, size = 0x10000, scoped, tag = 'output window, operand 0']
    %6 = vsyncpa [#allocation3], 0
    %s7 = scalar_lea.sflag [#allocation3], 1
    %8 = vsyncpa %s7, 0
    %9 = vsyncpa [#allocation4], 0
    %s10 = scalar_lea.sflag [#allocation4], 1
    %11 = vsyncpa %s10, 0
    loop: start=0, step=1, limit=4
    $region2: #{tpu_custom_call.1} parent=1 // loop_pre_header
      _
    $region3: #{tpu_custom_call.1} parent=1 // loop_header
      %s13 = sphi 0, %s17
      %p14 = scmp.ge.s32.totalorder %s13, 4
      %s20 = sphi 0, %s32
      %s21 = sphi 0, %s28
      %s22 = sphi 0, %s20
      %s23 = sphi 0, %s21
      %s24 = sphi 0, %s22
      %s25 = sphi 0, %s23
      %s37 = sphi 0, %s39
      %s40 = sphi 0, %s37
      %s41 = sphi 0, %s40
      %s57 = sphi 0, %s41
      %s65 = sphi 0, %s67
      %s68 = sphi 0, %s65
      %s69 = sphi 0, %s68
      %s85 = sphi 0, %s69
    $region4: #{tpu_custom_call.1} parent=1 // loop_header_branch
      %16 = sbr.rel (%p14) target = $region8
    $region5: #{tpu_custom_call.1} parent=1 // loop_body
      %s18 = ssub.s32 %s13, 1
      %s19 = ssub.s32 %s13, 2
      %s26 = sadd.s32 1, %s21
      %p27 = scmp.ge.s32.totalorder %s26, 2
      %s28 = scalar_select %p27, 0, %s26
      %s29 = sadd.s32 1, %s20
      %s30 = scalar_select %p27, %s29, %s20
      %p31 = scmp.ge.s32.totalorder %s30, 1
      %s32 = scalar_select %p31, 0, %s30
      %s33 = ssub.s32 %s20, %s32
      %s34 = ssub.s32 %s21, %s28
      %s35 = sor.u32 %s33, %s34
      %p36 = scmp.eq.s32.totalorder %s35, 0
      %s38 = sadd.s32 %s37, 1
      %s39 = scalar_select %p36, %s37, %s38
      %p42 = pneg %p36
      %p43 = scmp.eq.s32.totalorder %s13, 1
      %p44 = por %p42, %p43
      %p45 = scmp.ne.s32.totalorder %s37, %s40
      %p46 = scmp.eq.s32.totalorder %s13, 0
      %p47 = por %p45, %p46
      %p48 = scmp.ne.s32.totalorder %s37, %s40
      %p49 = scmp.eq.s32.totalorder %s18, 1
      %p50 = por %p48, %p49
      %p51 = scmp.ne.s32.totalorder %s40, %s41
      %p52 = scmp.eq.s32.totalorder %s18, 0
      %p53 = por %p51, %p52
      %p54 = scmp.ne.s32.totalorder %s40, %s41
      %p55 = scmp.eq.s32.totalorder %s19, 1
      %p56 = por %p54, %p55
      %p58 = scmp.ne.s32.totalorder %s41, %s57
      %p59 = scmp.eq.s32.totalorder %s19, 0
      %p60 = por %p58, %p59
      %s61 = ssub.s32 %s20, %s32
      %s62 = ssub.s32 %s21, %s28
      %s63 = sor.u32 %s61, %s62
      %p64 = scmp.eq.s32.totalorder %s63, 0
      %s66 = sadd.s32 %s65, 1
      %s67 = scalar_select %p64, %s65, %s66
      %p70 = pneg %p64
      %p71 = scmp.eq.s32.totalorder %s13, 1
      %p72 = por %p70, %p71
      %p73 = scmp.ne.s32.totalorder %s65, %s68
      %p74 = scmp.eq.s32.totalorder %s13, 0
      %p75 = por %p73, %p74
      %p76 = scmp.ne.s32.totalorder %s65, %s68
      %p77 = scmp.eq.s32.totalorder %s18, 1
      %p78 = por %p76, %p77
      %p79 = scmp.ne.s32.totalorder %s68, %s69
      %p80 = scmp.eq.s32.totalorder %s18, 0
      %p81 = por %p79, %p80
      %p82 = scmp.ne.s32.totalorder %s68, %s69
      %p83 = scmp.eq.s32.totalorder %s19, 1
      %p84 = por %p82, %p83
      %p86 = scmp.ne.s32.totalorder %s69, %s85
      %p87 = scmp.eq.s32.totalorder %s19, 0
      %p88 = por %p86, %p87
      %p89 = scmp.le.s32.totalorder 1, %s13
      %p90 = scmp.lt.s32.totalorder %s13, 3
      %p91 = pnand %p89, %p90
      %p92 = pneg %p91
      // Predicated region
      $region9: #{tpu_custom_call.1} parent=5 // pred_check
        _
      $region10: #{tpu_custom_call.1} parent=5 // pred_check_branch
        %94 = sbr.rel (%p91) target = $region12
      $region11: #{tpu_custom_call.1} parent=5 // pred_region
        %s95 = ssub.s32 %s13, 1
      $region12: #{tpu_custom_call.1} parent=5 // pred_fallthru
        _
      %p96 = scmp.lt.s32.totalorder %s13, 2
      // Predicated region
      $region13: #{tpu_custom_call.1} parent=5 // pred_check
        %p97 = pneg %p96
      $region14: #{tpu_custom_call.1} parent=5 // pred_check_branch
        %99 = sbr.rel (%p97) target = $region16
      $region15: #{tpu_custom_call.1} parent=5 // pred_region
        // Predicated region
        $region17: #{tpu_custom_call.1} parent=15 // pred_check
          %p100 = pneg %p47
        $region18: #{tpu_custom_call.1} parent=15 // pred_check_branch
          %102 = sbr.rel (%p100) target = $region20
        $region19: #{tpu_custom_call.1} parent=15 // pred_region
          %s103 = sand.u32 %s37, 1
          %s104 = scalar_lea.sflag [#allocation3], %s103
          %s105 = sand.u32 %s37, 1
          %s106 = smul.addr %s105, 64
          %s107 = scalar_lea.vmem [#allocation2], %s106
          %s108 = smul.u32 2, %s20
          %s109 = smul.u32 4, %s21
          %111 = vsyncadd %s104, 0
          %s112 = smul.addr %s108, 8
          %s113 = sadd.s32 %s109, %s112
          %s114 = smul.addr %s113, 8
          %s115 = scalar_lea.hbm %s0, %s114
          %s116 = sshll.u32 %s115, 4
          %s117 = int_to_ptr.hbm [resolvable:$true] %s116
          %s118 = sshll.u32 %s107, 4
          %s119 = int_to_ptr.vmem [resolvable:$true] %s118
          %124 = dma.hbm_to_vmem [thread:$0]  %s117, 1024, %s119, %s104, 1024, 512, 32
        $region20: #{tpu_custom_call.1} parent=15 // pred_fallthru
          _
      $region16: #{tpu_custom_call.1} parent=5 // pred_fallthru
        _
      %p125 = scmp.le.s32.totalorder 1, %s13
      %p126 = scmp.lt.s32.totalorder %s13, 3
      %p127 = pnand %p125, %p126
      %p128 = pneg %p127
      // Predicated region
      $region21: #{tpu_custom_call.1} parent=5 // pred_check
        _
      $region22: #{tpu_custom_call.1} parent=5 // pred_check_branch
        %130 = sbr.rel (%p127) target = $region24
      $region23: #{tpu_custom_call.1} parent=5 // pred_region
        %s131 = ssub.s32 %s13, 1
        %s132 = sand.u32 %s40, 1
        %s133 = scalar_lea.sflag [#allocation3], %s132
        %s134 = sand.u32 %s40, 1
        %s135 = smul.addr %s134, 64
        %s136 = scalar_lea.vmem [#allocation2], %s135
        // Predicated region
        $region25: #{tpu_custom_call.1} parent=23 // pred_check
          %p137 = pneg %p53
        $region26: #{tpu_custom_call.1} parent=23 // pred_check_branch
          %139 = sbr.rel (%p137) target = $region28
        $region27: #{tpu_custom_call.1} parent=23 // pred_region
          %141 = dma.done %s133, 1024
        $region28: #{tpu_custom_call.1} parent=23 // pred_fallthru
          _
        %s142 = sand.u32 %s40, 1
        %s143 = scalar_lea.sflag [#allocation3], %s142
        %s144 = sand.u32 %s40, 1
        %s145 = smul.addr %s144, 64
        %s146 = scalar_lea.vmem [#allocation2], %s145
        %p147 = pneg %p53
        %p148 = pneg %p50
        %p149 = pneg %p81
        %p150 = pneg %p78
        %s151 = sand.u32 %s68, 1
        %s152 = scalar_lea.sflag [#allocation4], %s151
        %s153 = sand.u32 %s68, 1
        %s154 = smul.addr %s153, 64
        %s155 = scalar_lea.vmem [#allocation5], %s154
        %s156 = smul.u32 2, %s22
        %s157 = smul.u32 4, %s23
        %s158 = smul.u32 2, %s22
        %s159 = smul.u32 4, %s23
        %v160 = vld [vmem:[%s136] sm:$0xff]
        %v161 = vld [vmem:[%s136 + $0x8] sm:$0xff]
        %v162 = vld [vmem:[%s136 + $0x10] sm:$0xff]
        %v163 = vld [vmem:[%s136 + $0x18] sm:$0xff]
        %v164 = vld [vmem:[%s136 + $0x20] sm:$0xff]
        %v165 = vld [vmem:[%s136 + $0x28] sm:$0xff]
        %v166 = vld [vmem:[%s136 + $0x30] sm:$0xff]
        %v167 = vld [vmem:[%s136 + $0x38] sm:$0xff]
        %168 = vst [vmem:[%s155] sm:$0xff] %v160
        %169 = vst [vmem:[%s155 + $0x8] sm:$0xff] %v161
        %170 = vst [vmem:[%s155 + $0x10] sm:$0xff] %v162
        %171 = vst [vmem:[%s155 + $0x18] sm:$0xff] %v163
        %172 = vst [vmem:[%s155 + $0x20] sm:$0xff] %v164
        %173 = vst [vmem:[%s155 + $0x28] sm:$0xff] %v165
        %174 = vst [vmem:[%s155 + $0x30] sm:$0xff] %v166
        %175 = vst [vmem:[%s155 + $0x38] sm:$0xff] %v167
        %s176 = sand.u32 %s68, 1
        %s177 = scalar_lea.sflag [#allocation4], %s176
        %s178 = sand.u32 %s68, 1
        %s179 = smul.addr %s178, 64
        %s180 = scalar_lea.vmem [#allocation5], %s179
        // Predicated region
        $region29: #{tpu_custom_call.1} parent=23 // pred_check
          %p181 = pneg %p78
        $region30: #{tpu_custom_call.1} parent=23 // pred_check_branch
          %183 = sbr.rel (%p181) target = $region32
        $region31: #{tpu_custom_call.1} parent=23 // pred_region
          %s184 = smul.u32 2, %s22
          %s185 = smul.u32 4, %s23
          %187 = vsyncadd %s177, 0
          %s188 = smul.addr %s184, 8
          %s189 = sadd.s32 %s185, %s188
          %s190 = smul.addr %s189, 8
          %s191 = scalar_lea.hbm %s1, %s190
          %s192 = sshll.u32 %s180, 4
          %s193 = int_to_ptr.vmem [resolvable:$true] %s192
          %s194 = sshll.u32 %s191, 4
          %s195 = int_to_ptr.hbm [resolvable:$true] %s194
          %200 = dma.vmem_to_hbm [thread:$0]  %s193, 1024, %s195, %s177, 512, 1024, 32
        $region32: #{tpu_custom_call.1} parent=23 // pred_fallthru
          _
      $region24: #{tpu_custom_call.1} parent=5 // pred_fallthru
        _
      %p201 = scmp.le.s32.totalorder 2, %s13
      // Predicated region
      $region33: #{tpu_custom_call.1} parent=5 // pred_check
        %p202 = pneg %p201
      $region34: #{tpu_custom_call.1} parent=5 // pred_check_branch
        %204 = sbr.rel (%p202) target = $region36
      $region35: #{tpu_custom_call.1} parent=5 // pred_region
        %s205 = ssub.s32 %s13, 2
        // Predicated region
        $region37: #{tpu_custom_call.1} parent=35 // pred_check
          %p206 = pneg %p84
        $region38: #{tpu_custom_call.1} parent=35 // pred_check_branch
          %208 = sbr.rel (%p206) target = $region40
        $region39: #{tpu_custom_call.1} parent=35 // pred_region
          %s209 = sand.u32 %s69, 1
          %s210 = scalar_lea.sflag [#allocation4], %s209
          %s211 = sand.u32 %s69, 1
          %s212 = smul.addr %s211, 64
          %s213 = scalar_lea.vmem [#allocation5], %s212
          %215 = dma.done %s210, 1024
        $region40: #{tpu_custom_call.1} parent=35 // pred_fallthru
          _
      $region36: #{tpu_custom_call.1} parent=5 // pred_fallthru
        _
    $region6: #{tpu_custom_call.1} parent=1 // loop_footer
      %s17 = sadd.s32 1, %s13
    $region7: #{tpu_custom_call.1} parent=1 // loop_footer_branch
      %12 = sbr.rel target = $region3
    $region8: #{tpu_custom_call.1} parent=1 // loop_exit
      _
    %216 = vsyncpa [#allocation3], 1
    %s217 = scalar_lea.sflag [#allocation3], 1
    %218 = vsyncpa %s217, 1
    %219 = vsyncpa [#allocation4], 1
    %s220 = scalar_lea.sflag [#allocation4], 1
    %221 = vsyncpa %s220, 1

</llo_original>
